<compile_context>
chip_gen: v6e
topology: v6e:2x2x1
jax: 0.10.0
libtpu: 0.0.40
codegen_flags: <defaults>
</compile_context>

<pallas_src>
import jax
import jax.numpy as jnp
from jax.experimental import pallas as pl
from jax.experimental.pallas import tpu as pltpu

IN_FEATURES = 136   # fixed by the module
K_PAD = 144         # 136 -> next multiple of 16 (bf16 sublane packing); row 136 = ones for b1


def mlp_kernel(xT_ref, w1_ref, w2_ref, b2_ref, w3_ref, b3_ref, o_ref):
    # Layer 1: (n1, K_PAD) @ (K_PAD, TB) -> (n1, TB); b1 is folded in via the
    # ones-row of xT / b1-column of w1p, so no separate bias add.
    h1 = jnp.dot(w1_ref[...], xT_ref[...], preferred_element_type=jnp.float32)
    h1 = jnp.maximum(h1, 0.0).astype(jnp.bfloat16)
    # Layer 2: (n2, n1) @ (n1, TB) -> (n2, TB), f32 bias + ReLU.
    h2 = jnp.dot(w2_ref[...], h1, preferred_element_type=jnp.float32)
    h2 = jnp.maximum(h2 + b2_ref[...], 0.0)
    # Layer 3: single output row -> VPU multiply + sublane reduction (XLU slot is
    # idle here) instead of an M=1 MXU matmul; scalar bias from SMEM; sigmoid (EUP).
    z = jnp.sum(w3_ref[...] * h2, axis=0, keepdims=True) + b3_ref[0, 0]
    o_ref[...] = jax.nn.sigmoid(z).astype(o_ref.dtype)


def mlp_forward(x, w1, b1, w2, b2, w3, b3, *, tb=256):
    """x: (batch, 136) f32.  Weights in torch layout: w_k (fan_out, fan_in), b_k (fan_out,)."""
    batch, k = x.shape
    n1 = w1.shape[0]
    n2 = w2.shape[0]
    num_tiles = pl.cdiv(batch, tb)
    batch_pad = num_tiles * tb

    # Host-side prep (single small pass): pad K 136->144, put batch on the lane dim,
    # cast MXU operands to bf16, and set pad-row 136 to ones so b1 rides through the
    # layer-1 matmul for free.  Pad columns beyond `batch` produce garbage that is
    # sliced off at the end.
    # TODO(synk): could be fused into the kernel (stream (tb,136) f32 + in-kernel
    # transpose) to save one HBM pass; kept host-side for robust lowering.
    xT = jnp.zeros((K_PAD, batch_pad), jnp.bfloat16)
    xT = xT.at[:k, :batch].set(x.T.astype(jnp.bfloat16))
    xT = xT.at[k, :].set(1.0)

    w1p = jnp.zeros((n1, K_PAD), jnp.bfloat16)
    w1p = w1p.at[:, :k].set(w1.astype(jnp.bfloat16))
    w1p = w1p.at[:, k].set(b1.astype(jnp.bfloat16))

    w2b = w2.astype(jnp.bfloat16)
    b2c = b2.reshape(n2, 1).astype(jnp.float32)
    w3c = w3.reshape(n2, 1).astype(jnp.float32)   # layer-3 weights kept f32 for VPU reduce
    b3c = b3.reshape(1, 1).astype(jnp.float32)

    out_t = pl.pallas_call(
        mlp_kernel,
        out_shape=jax.ShapeDtypeStruct((1, batch_pad), jnp.float32),
        grid=(num_tiles,),
        in_specs=[
            # x tiles stream through the pipeline (batch on lanes)
            pl.BlockSpec((K_PAD, tb), lambda i: (0, i)),
            # weights / biases: constant index_map -> DMA'd once, VMEM-resident
            pl.BlockSpec((n1, K_PAD), lambda i: (0, 0)),
            pl.BlockSpec((n2, n1), lambda i: (0, 0)),
            pl.BlockSpec((n2, 1), lambda i: (0, 0)),
            pl.BlockSpec((n2, 1), lambda i: (0, 0)),
            # scalar layer-3 bias lives in SMEM
            pl.BlockSpec(memory_space=pltpu.MemorySpace.SMEM),
        ],
        out_specs=pl.BlockSpec((1, tb), lambda i: (0, i)),
        compiler_params=pltpu.CompilerParams(
            dimension_semantics=("parallel",),
        ),
    )(xT, w1p, w2b, b2c, w3c, b3c)

    # Back to (batch, 1) row-major, dropping batch padding.
    return out_t.T[:batch]


def init_linear(key, fan_in, fan_out):
    # PyTorch nn.Linear default init: U(-1/sqrt(fan_in), 1/sqrt(fan_in)),
    # torch layout: W (fan_out, fan_in), b (fan_out,)
    kw, kb = jax.random.split(key)
    bound = 1.0 / (fan_in ** 0.5)
    w = jax.random.uniform(kw, (fan_out, fan_in), jnp.float32, -bound, bound)
    b = jax.random.uniform(kb, (fan_out,), jnp.float32, -bound, bound)
    return w, b


if __name__ == "__main__":
    params = {"n1": 64, "n2": 32}
    batch = 512          # tb=256 -> grid of 2: pipelined and splittable across 2 TCs on v7x
    TB = 256

    key = jax.random.PRNGKey(0)
    kx, k1, k2, k3 = jax.random.split(key, 4)

    x = jax.random.normal(kx, (batch, IN_FEATURES), jnp.float32)
    w1, b1 = init_linear(k1, IN_FEATURES, params["n1"])
    w2, b2 = init_linear(k2, params["n1"], params["n2"])
    w3, b3 = init_linear(k3, params["n2"], 1)

    out = mlp_forward(x, w1, b1, w2, b2, w3, b3, tb=TB)
    out = jax.block_until_ready(out)

    # Reference in plain JAX using the same bf16-input / f32-accumulate recipe
    # (b1 passes through the MXU as bf16 in the kernel, so match that here).
    xb = x.astype(jnp.bfloat16)
    h1 = jnp.maximum(
        jnp.dot(xb, w1.astype(jnp.bfloat16).T, preferred_element_type=jnp.float32)
        + b1.astype(jnp.bfloat16).astype(jnp.float32)[None, :], 0.0)
    h2 = jnp.maximum(
        jnp.dot(h1.astype(jnp.bfloat16), w2.astype(jnp.bfloat16).T,
                preferred_element_type=jnp.float32) + b2[None, :], 0.0)
    ref = jax.nn.sigmoid(jnp.dot(h2, w3.T) + b3[None, :])

    assert out.shape == (batch, 1)
    assert jnp.allclose(out, ref, atol=1e-3, rtol=1e-3), float(jnp.abs(out - ref).max())

    print("KERNEL_OK")
</pallas_src>

<mosaic_0001>
module attributes {stable_mosaic.version = 11 : i64} {
  func.func @mlp_kernel(%arg0: i32, %arg1: memref<144x256xbf16, #tpu.memory_space<vmem>>, %arg2: memref<64x144xbf16, #tpu.memory_space<vmem>>, %arg3: memref<32x64xbf16, #tpu.memory_space<vmem>>, %arg4: memref<32x1xf32, #tpu.memory_space<vmem>>, %arg5: memref<32x1xf32, #tpu.memory_space<vmem>>, %arg6: memref<1x1xf32, #tpu.memory_space<smem>>, %arg7: memref<1x256xf32, #tpu.memory_space<vmem>>) attributes {dimension_semantics = [#tpu.dimension_semantics<parallel>], iteration_bounds = array<i64: 2>, scalar_prefetch = 0 : i64, scratch_operands = 0 : i64, tpu.core_type = #tpu.core_type<tc>, window_params = [{transform_indices = @transform_0, window_bounds = array<i64: 144, 256>}, {pipeline_mode = #tpu.pipeline_mode<synchronous>, transform_indices = @transform_1, window_bounds = array<i64: 64, 144>}, {pipeline_mode = #tpu.pipeline_mode<synchronous>, transform_indices = @transform_2, window_bounds = array<i64: 32, 64>}, {pipeline_mode = #tpu.pipeline_mode<synchronous>, transform_indices = @transform_3, window_bounds = array<i64: 32, 1>}, {pipeline_mode = #tpu.pipeline_mode<synchronous>, transform_indices = @transform_4, window_bounds = array<i64: 32, 1>}, {transform_indices = @transform_5, window_bounds = array<i64: 1, 1>}, {transform_indices = @transform_6, window_bounds = array<i64: 1, 256>}]} {
    %c0 = arith.constant 0 : index
    %c0_0 = arith.constant 0 : index
    %0 = vector.load %arg2[%c0, %c0_0] : memref<64x144xbf16, #tpu.memory_space<vmem>>, vector<64x144xbf16>
    %c0_1 = arith.constant 0 : index
    %c0_2 = arith.constant 0 : index
    %1 = vector.load %arg1[%c0_1, %c0_2] : memref<144x256xbf16, #tpu.memory_space<vmem>>, vector<144x256xbf16>
    %cst = arith.constant dense<0.000000e+00> : vector<64x256xf32>
    %2 = tpu.matmul %0, %1, %cst {dimension_numbers = #tpu.dot_dimension_numbers<[1], [0], [0], [1], [0, 0, 1, 1], [], []>} : vector<64x144xbf16>, vector<144x256xbf16>, vector<64x256xf32> -> vector<64x256xf32>
    %cst_3 = arith.constant 0.000000e+00 : f32
    %3 = vector.broadcast %cst_3 : f32 to vector<64x256xf32>
    %4 = arith.maximumf %2, %3 : vector<64x256xf32>
    %5 = arith.truncf %4 : vector<64x256xf32> to vector<64x256xbf16>
    %c0_4 = arith.constant 0 : index
    %c0_5 = arith.constant 0 : index
    %6 = vector.load %arg3[%c0_4, %c0_5] : memref<32x64xbf16, #tpu.memory_space<vmem>>, vector<32x64xbf16>
    %cst_6 = arith.constant dense<0.000000e+00> : vector<32x256xf32>
    %7 = tpu.matmul %6, %5, %cst_6 {dimension_numbers = #tpu.dot_dimension_numbers<[1], [0], [0], [1], [0, 0, 1, 1], [], []>} : vector<32x64xbf16>, vector<64x256xbf16>, vector<32x256xf32> -> vector<32x256xf32>
    %c0_7 = arith.constant 0 : index
    %c0_8 = arith.constant 0 : index
    %8 = vector.load %arg4[%c0_7, %c0_8] : memref<32x1xf32, #tpu.memory_space<vmem>>, vector<32x1xf32>
    %9 = vector.broadcast %8 : vector<32x1xf32> to vector<32x256xf32>
    %10 = arith.addf %7, %9 : vector<32x256xf32>
    %cst_9 = arith.constant 0.000000e+00 : f32
    %11 = vector.broadcast %cst_9 : f32 to vector<32x256xf32>
    %12 = arith.maximumf %10, %11 : vector<32x256xf32>
    %c0_10 = arith.constant 0 : index
    %c0_11 = arith.constant 0 : index
    %13 = vector.load %arg5[%c0_10, %c0_11] : memref<32x1xf32, #tpu.memory_space<vmem>>, vector<32x1xf32>
    %14 = vector.broadcast %13 : vector<32x1xf32> to vector<32x256xf32>
    %15 = arith.mulf %14, %12 : vector<32x256xf32>
    %cst_12 = arith.constant dense<0.000000e+00> : vector<256xf32>
    %16 = vector.multi_reduction <add>, %15, %cst_12 [0] : vector<32x256xf32> to vector<256xf32>
    %17 = vector.shape_cast %16 : vector<256xf32> to vector<1x256xf32>
    %c0_13 = arith.constant 0 : index
    %c0_14 = arith.constant 0 : index
    %18 = memref.load %arg6[%c0_13, %c0_14] : memref<1x1xf32, #tpu.memory_space<smem>>
    %19 = vector.broadcast %18 : f32 to vector<1x256xf32>
    %20 = arith.addf %17, %19 : vector<1x256xf32>
    %21 = arith.negf %20 : vector<1x256xf32>
    %22 = math.exp %21 : vector<1x256xf32>
    %cst_15 = arith.constant 1.000000e+00 : f32
    %23 = vector.broadcast %cst_15 : f32 to vector<1x256xf32>
    %24 = arith.addf %23, %22 : vector<1x256xf32>
    %25 = arith.divf %23, %24 : vector<1x256xf32>
    %c0_16 = arith.constant 0 : index
    %c0_17 = arith.constant 0 : index
    %26 = vector.load %arg7[%c0_16, %c0_17] : memref<1x256xf32, #tpu.memory_space<vmem>>, vector<1x256xf32>
    tpu.vector_store %arg7[%c0_16, %c0_17], %25 {strides = array<i32>} : memref<1x256xf32, #tpu.memory_space<vmem>>, vector<1x256xf32>,
    return
  }
  func.func @transform_0(%arg0: i32) -> (i32, i32) {
    %c0_i32 = arith.constant 0 : i32
    %c0_i32_0 = arith.constant 0 : i32
    return %c0_i32, %arg0 : i32, i32
  }
  func.func @transform_1(%arg0: i32) -> (i32, i32) {
    %c0_i32 = arith.constant 0 : i32
    %c0_i32_0 = arith.constant 0 : i32
    %c0_i32_1 = arith.constant 0 : i32
    return %c0_i32, %c0_i32_0 : i32, i32
  }
  func.func @transform_2(%arg0: i32) -> (i32, i32) {
    %c0_i32 = arith.constant 0 : i32
    %c0_i32_0 = arith.constant 0 : i32
    %c0_i32_1 = arith.constant 0 : i32
    return %c0_i32, %c0_i32_0 : i32, i32
  }
  func.func @transform_3(%arg0: i32) -> (i32, i32) {
    %c0_i32 = arith.constant 0 : i32
    %c0_i32_0 = arith.constant 0 : i32
    %c0_i32_1 = arith.constant 0 : i32
    return %c0_i32, %c0_i32_0 : i32, i32
  }
  func.func @transform_4(%arg0: i32) -> (i32, i32) {
    %c0_i32 = arith.constant 0 : i32
    %c0_i32_0 = arith.constant 0 : i32
    %c0_i32_1 = arith.constant 0 : i32
    return %c0_i32, %c0_i32_0 : i32, i32
  }
  func.func @transform_5(%arg0: i32) -> (i32, i32) {
    %c0_i32 = arith.constant 0 : i32
    %c0_i32_0 = arith.constant 0 : i32
    %c0_i32_1 = arith.constant 0 : i32
    return %c0_i32, %c0_i32_0 : i32, i32
  }
  func.func @transform_6(%arg0: i32) -> (i32, i32) {
    %c0_i32 = arith.constant 0 : i32
    %c0_i32_0 = arith.constant 0 : i32
    return %c0_i32, %arg0 : i32, i32
  }
}

</mosaic_0001>

<llo_original>
// kernel: tpu_custom_call.1
$region0: #{tpu_custom_call.1}
  #allocation0 [shape = 'u32[]', space=smem, size = 0x4, offset = 0x4, fixed_abs, tag = 'smem constant byte address 0x4 - core index']
  #allocation1 [shape = 'u32[144,128]{1,0:T(1,128)}', space=vmem, size = 0x12000, scoped, tag = 'internal scratch']
  #allocation2 [shape = 'f32[1,1]{1,0:T(1,128)S(6)}', space=smem, size = 0x200, scoped, tag = 'scoped memory for tpu_custom_call.1']
  %s0 = inlined_call_operand.hbm [shape: bf16[144,512], index: 0, kind: input, shape index: {}]
  %s1 = inlined_call_operand.vmem [shape: bf16[64,144], index: 1, kind: input, shape index: {}]
  %s2 = inlined_call_operand.hbm [shape: bf16[32,64], index: 2, kind: input, shape index: {}]
  %s3 = inlined_call_operand.vmem [shape: f32[32,1], index: 3, kind: input, shape index: {}]
  %s4 = inlined_call_operand.vmem [shape: f32[32,1], index: 4, kind: input, shape index: {}]
  %s5 = inlined_call_operand.<no memory space> [shape: f32[1,1], index: 5, kind: input, shape index: {}]
  %s6 = inlined_call_operand.hbm [shape: f32[1,512], index: 6, kind: output, shape index: {}]
  %s7 = sld [smem:[#allocation0]]
  $region65: #{tpu_custom_call.1} parent=0
    _
  %s9 = ssub.s32 1, %s7
  %s10 = scalar_select 0, %s9, %s7
  %11 = sst [smem:[#allocation2]] %s5
  $region1: #{tpu_custom_call.1} parent=0
    #allocation3 [shape = 'u8[147456]{0}', space=vmem, size = 0x24000, scoped, tag = 'input window, operand 0']
    #allocation4 [shape = 's32[2]{0}', space=sflag, size = 0x8, scoped, tag = 'scoped memory for tpu_custom_call.1']
    #allocation5 [shape = 's32[2]{0}', space=sflag, size = 0x8, scoped, tag = 'scoped memory for tpu_custom_call.1']
    #allocation6 [shape = 'u8[8192]{0}', space=vmem, size = 0x2000, scoped, tag = 'input window, operand 2, single buffered']
    #allocation7 [shape = 's32[1]{0}', space=sflag, size = 0x4, scoped, tag = 'scoped memory for tpu_custom_call.1']
    #allocation8 [shape = 'u8[2048]{0}', space=vmem, size = 0x800, scoped, tag = 'output window, operand 0']
    %12 = vsyncpa [#allocation4], 0
    %s13 = scalar_lea.sflag [#allocation4], 1
    %14 = vsyncpa %s13, 0
    %15 = vsyncpa [#allocation7], 0
    %16 = vsyncpa [#allocation5], 0
    %s17 = scalar_lea.sflag [#allocation5], 1
    %18 = vsyncpa %s17, 0
    loop: start=0, step=1, limit=4
    $region2: #{tpu_custom_call.1} parent=1 // loop_pre_header
      _
    $region3: #{tpu_custom_call.1} parent=1 // loop_header
      %s20 = sphi 0, %s24
      %p21 = scmp.ge.s32.totalorder %s20, 4
      %s30 = sphi 0, %s32
      %s33 = sphi 0, %s30
      %s34 = sphi 0, %s33
      %s50 = sphi 0, %s34
      %s54 = sphi 0, %s54
      %s56 = sphi 0, %s54
      %s57 = sphi 0, %s56
      %s71 = sphi 0, %s57
      %s75 = sphi 0, %s75
      %s77 = sphi 0, %s75
      %s78 = sphi 0, %s77
      %s92 = sphi 0, %s78
      %s96 = sphi 0, %s96
      %s98 = sphi 0, %s96
      %s99 = sphi 0, %s98
      %s113 = sphi 0, %s99
      %s117 = sphi 0, %s117
      %s119 = sphi 0, %s117
      %s120 = sphi 0, %s119
      %s134 = sphi 0, %s120
      %s138 = sphi 0, %s138
      %s140 = sphi 0, %s138
      %s141 = sphi 0, %s140
      %s155 = sphi 0, %s141
      %s161 = sphi 0, %s163
      %s164 = sphi 0, %s161
      %s165 = sphi 0, %s164
      %s181 = sphi 0, %s165
    $region4: #{tpu_custom_call.1} parent=1 // loop_header_branch
      %23 = sbr.rel (%p21) target = $region8
    $region5: #{tpu_custom_call.1} parent=1 // loop_body
      %s25 = ssub.s32 %s20, 1
      %s26 = ssub.s32 %s20, 2
      %s27 = sadd.s32 %s20, 1
      %s28 = ssub.s32 %s20, %s27
      %p29 = scmp.eq.s32.totalorder %s28, 0
      %s31 = sadd.s32 %s30, 1
      %s32 = scalar_select %p29, %s30, %s31
      %p35 = pneg %p29
      %p36 = scmp.eq.s32.totalorder %s20, 1
      %p37 = por %p35, %p36
      %p38 = scmp.ne.s32.totalorder %s30, %s33
      %p39 = scmp.eq.s32.totalorder %s20, 0
      %p40 = por %p38, %p39
      %p41 = scmp.ne.s32.totalorder %s30, %s33
      %p42 = scmp.eq.s32.totalorder %s25, 1
      %p43 = por %p41, %p42
      %p44 = scmp.ne.s32.totalorder %s33, %s34
      %p45 = scmp.eq.s32.totalorder %s25, 0
      %p46 = por %p44, %p45
      %p47 = scmp.ne.s32.totalorder %s33, %s34
      %p48 = scmp.eq.s32.totalorder %s26, 1
      %p49 = por %p47, %p48
      %p51 = scmp.ne.s32.totalorder %s34, %s50
      %p52 = scmp.eq.s32.totalorder %s26, 0
      %p53 = por %p51, %p52
      %s55 = sadd.s32 %s54, 1
      %p58 = scmp.eq.s32.totalorder %s20, 1
      %p59 = scmp.ne.s32.totalorder %s54, %s56
      %p60 = scmp.eq.s32.totalorder %s20, 0
      %p61 = por %p59, %p60
      %p62 = scmp.ne.s32.totalorder %s54, %s56
      %p63 = scmp.eq.s32.totalorder %s25, 1
      %p64 = por %p62, %p63
      %p65 = scmp.ne.s32.totalorder %s56, %s57
      %p66 = scmp.eq.s32.totalorder %s25, 0
      %p67 = por %p65, %p66
      %p68 = scmp.ne.s32.totalorder %s56, %s57
      %p69 = scmp.eq.s32.totalorder %s26, 1
      %p70 = por %p68, %p69
      %p72 = scmp.ne.s32.totalorder %s57, %s71
      %p73 = scmp.eq.s32.totalorder %s26, 0
      %p74 = por %p72, %p73
      %s76 = sadd.s32 %s75, 1
      %p79 = scmp.eq.s32.totalorder %s20, 1
      %p80 = scmp.ne.s32.totalorder %s75, %s77
      %p81 = scmp.eq.s32.totalorder %s20, 0
      %p82 = por %p80, %p81
      %p83 = scmp.ne.s32.totalorder %s75, %s77
      %p84 = scmp.eq.s32.totalorder %s25, 1
      %p85 = por %p83, %p84
      %p86 = scmp.ne.s32.totalorder %s77, %s78
      %p87 = scmp.eq.s32.totalorder %s25, 0
      %p88 = por %p86, %p87
      %p89 = scmp.ne.s32.totalorder %s77, %s78
      %p90 = scmp.eq.s32.totalorder %s26, 1
      %p91 = por %p89, %p90
      %p93 = scmp.ne.s32.totalorder %s78, %s92
      %p94 = scmp.eq.s32.totalorder %s26, 0
      %p95 = por %p93, %p94
      %s97 = sadd.s32 %s96, 1
      %p100 = scmp.eq.s32.totalorder %s20, 1
      %p101 = scmp.ne.s32.totalorder %s96, %s98
      %p102 = scmp.eq.s32.totalorder %s20, 0
      %p103 = por %p101, %p102
      %p104 = scmp.ne.s32.totalorder %s96, %s98
      %p105 = scmp.eq.s32.totalorder %s25, 1
      %p106 = por %p104, %p105
      %p107 = scmp.ne.s32.totalorder %s98, %s99
      %p108 = scmp.eq.s32.totalorder %s25, 0
      %p109 = por %p107, %p108
      %p110 = scmp.ne.s32.totalorder %s98, %s99
      %p111 = scmp.eq.s32.totalorder %s26, 1
      %p112 = por %p110, %p111
      %p114 = scmp.ne.s32.totalorder %s99, %s113
      %p115 = scmp.eq.s32.totalorder %s26, 0
      %p116 = por %p114, %p115
      %s118 = sadd.s32 %s117, 1
      %p121 = scmp.eq.s32.totalorder %s20, 1
      %p122 = scmp.ne.s32.totalorder %s117, %s119
      %p123 = scmp.eq.s32.totalorder %s20, 0
      %p124 = por %p122, %p123
      %p125 = scmp.ne.s32.totalorder %s117, %s119
      %p126 = scmp.eq.s32.totalorder %s25, 1
      %p127 = por %p125, %p126
      %p128 = scmp.ne.s32.totalorder %s119, %s120
      %p129 = scmp.eq.s32.totalorder %s25, 0
      %p130 = por %p128, %p129
      %p131 = scmp.ne.s32.totalorder %s119, %s120
      %p132 = scmp.eq.s32.totalorder %s26, 1
      %p133 = por %p131, %p132
      %p135 = scmp.ne.s32.totalorder %s120, %s134
      %p136 = scmp.eq.s32.totalorder %s26, 0
      %p137 = por %p135, %p136
      %s139 = sadd.s32 %s138, 1
      %p142 = scmp.eq.s32.totalorder %s20, 1
      %p143 = scmp.ne.s32.totalorder %s138, %s140
      %p144 = scmp.eq.s32.totalorder %s20, 0
      %p145 = por %p143, %p144
      %p146 = scmp.ne.s32.totalorder %s138, %s140
      %p147 = scmp.eq.s32.totalorder %s25, 1
      %p148 = por %p146, %p147
      %p149 = scmp.ne.s32.totalorder %s140, %s141
      %p150 = scmp.eq.s32.totalorder %s25, 0
      %p151 = por %p149, %p150
      %p152 = scmp.ne.s32.totalorder %s140, %s141
      %p153 = scmp.eq.s32.totalorder %s26, 1
      %p154 = por %p152, %p153
      %p156 = scmp.ne.s32.totalorder %s141, %s155
      %p157 = scmp.eq.s32.totalorder %s26, 0
      %p158 = por %p156, %p157
      %s159 = ssub.s32 %s20, %s27
      %p160 = scmp.eq.s32.totalorder %s159, 0
      %s162 = sadd.s32 %s161, 1
      %s163 = scalar_select %p160, %s161, %s162
      %p166 = pneg %p160
      %p167 = scmp.eq.s32.totalorder %s20, 1
      %p168 = por %p166, %p167
      %p169 = scmp.ne.s32.totalorder %s161, %s164
      %p170 = scmp.eq.s32.totalorder %s20, 0
      %p171 = por %p169, %p170
      %p172 = scmp.ne.s32.totalorder %s161, %s164
      %p173 = scmp.eq.s32.totalorder %s25, 1
      %p174 = por %p172, %p173
      %p175 = scmp.ne.s32.totalorder %s164, %s165
      %p176 = scmp.eq.s32.totalorder %s25, 0
      %p177 = por %p175, %p176
      %p178 = scmp.ne.s32.totalorder %s164, %s165
      %p179 = scmp.eq.s32.totalorder %s26, 1
      %p180 = por %p178, %p179
      %p182 = scmp.ne.s32.totalorder %s165, %s181
      %p183 = scmp.eq.s32.totalorder %s26, 0
      %p184 = por %p182, %p183
      %p185 = scmp.le.s32.totalorder 1, %s20
      %p186 = scmp.lt.s32.totalorder %s20, 3
      %p187 = pnand %p185, %p186
      %p188 = pneg %p187
      // Predicated region
      $region9: #{tpu_custom_call.1} parent=5 // pred_check
        _
      $region10: #{tpu_custom_call.1} parent=5 // pred_check_branch
        %190 = sbr.rel (%p187) target = $region12
      $region11: #{tpu_custom_call.1} parent=5 // pred_region
        %s191 = ssub.s32 %s20, 1
        // Predicated region
        $region13: #{tpu_custom_call.1} parent=11 // pred_check
          %p192 = pneg %p67
        $region14: #{tpu_custom_call.1} parent=11 // pred_check_branch
          %194 = sbr.rel (%p192) target = $region16
        $region15: #{tpu_custom_call.1} parent=11 // pred_region
          _
        $region16: #{tpu_custom_call.1} parent=11 // pred_fallthru
          _
        // Predicated region
        $region17: #{tpu_custom_call.1} parent=11 // pred_check
          %p195 = pneg %p88
        $region18: #{tpu_custom_call.1} parent=11 // pred_check_branch
          %197 = sbr.rel (%p195) target = $region20
        $region19: #{tpu_custom_call.1} parent=11 // pred_region
          %s199 = ssub.s32 256, 256
          %200 = vsyncadd [#allocation7], %s199
          %s201 = sshll.u32 [#allocation6], 4
          %s202 = int_to_ptr.vmem [resolvable:$true] %s201
          %207 = dma.hbm_to_vmem [thread:$0]  %s2, 256, %s202, [#allocation7], 64, 64, 4
        $region20: #{tpu_custom_call.1} parent=11 // pred_fallthru
          _
        // Predicated region
        $region21: #{tpu_custom_call.1} parent=11 // pred_check
          %p208 = pneg %p109
        $region22: #{tpu_custom_call.1} parent=11 // pred_check_branch
          %210 = sbr.rel (%p208) target = $region24
        $region23: #{tpu_custom_call.1} parent=11 // pred_region
          _
        $region24: #{tpu_custom_call.1} parent=11 // pred_fallthru
          _
        // Predicated region
        $region25: #{tpu_custom_call.1} parent=11 // pred_check
          %p211 = pneg %p130
        $region26: #{tpu_custom_call.1} parent=11 // pred_check_branch
          %213 = sbr.rel (%p211) target = $region28
        $region27: #{tpu_custom_call.1} parent=11 // pred_region
          _
        $region28: #{tpu_custom_call.1} parent=11 // pred_fallthru
          _
        // Predicated region
        $region29: #{tpu_custom_call.1} parent=11 // pred_check
          %p214 = pneg %p151
        $region30: #{tpu_custom_call.1} parent=11 // pred_check_branch
          %216 = sbr.rel (%p214) target = $region32
        $region31: #{tpu_custom_call.1} parent=11 // pred_region
          _
        $region32: #{tpu_custom_call.1} parent=11 // pred_fallthru
          _
      $region12: #{tpu_custom_call.1} parent=5 // pred_fallthru
        _
      %p217 = scmp.lt.s32.totalorder %s20, 2
      // Predicated region
      $region33: #{tpu_custom_call.1} parent=5 // pred_check
        %p218 = pneg %p217
      $region34: #{tpu_custom_call.1} parent=5 // pred_check_branch
        %220 = sbr.rel (%p218) target = $region36
      $region35: #{tpu_custom_call.1} parent=5 // pred_region
        // Predicated region
        $region37: #{tpu_custom_call.1} parent=35 // pred_check
          %p221 = pneg %p40
        $region38: #{tpu_custom_call.1} parent=35 // pred_check_branch
          %223 = sbr.rel (%p221) target = $region40
        $region39: #{tpu_custom_call.1} parent=35 // pred_region
          %s224 = sand.u32 %s30, 1
          %s225 = scalar_lea.sflag [#allocation4], %s224
          %s226 = sand.u32 %s30, 1
          %s227 = smul.addr %s226, 144
          %s228 = scalar_lea.vmem [#allocation3], %s227
          %s229 = smul.u32 2, %s20
          %s231 = ssub.s32 2304, 2304
          %232 = vsyncadd %s225, %s231
          %s233 = smul.addr %s229, 64
          %s234 = scalar_lea.hbm %s0, %s233
          %s235 = sshll.u32 %s228, 4
          %s236 = int_to_ptr.vmem [resolvable:$true] %s235
          %241 = dma.hbm_to_vmem [thread:$0]  %s234, 2304, %s236, %s225, 256, 128, 8
        $region40: #{tpu_custom_call.1} parent=35 // pred_fallthru
          _
      $region36: #{tpu_custom_call.1} parent=5 // pred_fallthru
        _
      %p242 = scmp.le.s32.totalorder 1, %s20
      %p243 = scmp.lt.s32.totalorder %s20, 3
      %p244 = pnand %p242, %p243
      %p245 = pneg %p244
      // Predicated region
      $region41: #{tpu_custom_call.1} parent=5 // pred_check
        _
      $region42: #{tpu_custom_call.1} parent=5 // pred_check_branch
        %247 = sbr.rel (%p244) target = $region44
      $region43: #{tpu_custom_call.1} parent=5 // pred_region
        %s248 = ssub.s32 %s20, 1
        %s249 = sand.u32 %s33, 1
        %s250 = scalar_lea.sflag [#allocation4], %s249
        %s251 = sand.u32 %s33, 1
        %s252 = smul.addr %s251, 144
        %s253 = scalar_lea.vmem [#allocation3], %s252
        // Predicated region
        $region45: #{tpu_custom_call.1} parent=43 // pred_check
          %p254 = pneg %p46
        $region46: #{tpu_custom_call.1} parent=43 // pred_check_branch
          %256 = sbr.rel (%p254) target = $region48
        $region47: #{tpu_custom_call.1} parent=43 // pred_region
          %257 = dma.done %s250, 2304
        $region48: #{tpu_custom_call.1} parent=43 // pred_fallthru
          _
        // Predicated region
        $region49: #{tpu_custom_call.1} parent=43 // pred_check
          %p258 = pneg %p88
        $region50: #{tpu_custom_call.1} parent=43 // pred_check_branch
          %260 = sbr.rel (%p258) target = $region52
        $region51: #{tpu_custom_call.1} parent=43 // pred_region
          %261 = dma.done [#allocation7], 256
        $region52: #{tpu_custom_call.1} parent=43 // pred_fallthru
          _
        %s262 = sand.u32 %s33, 1
        %s263 = scalar_lea.sflag [#allocation4], %s262
        %s264 = sand.u32 %s33, 1
        %s265 = smul.addr %s264, 144
        %s266 = scalar_lea.vmem [#allocation3], %s265
        %p267 = pneg %p46
        %p268 = pneg %p43
        %p269 = pneg %p67
        %p270 = pneg %p64
        %p271 = pneg %p88
        %p272 = pneg %p85
        %p273 = pneg %p109
        %p274 = pneg %p106
        %p275 = pneg %p130
        %p276 = pneg %p127
        %p277 = pneg %p151
        %p278 = pneg %p148
        %p279 = pneg %p177
        %p280 = pneg %p174
        %s281 = sand.u32 %s164, 1
        %s282 = scalar_lea.sflag [#allocation5], %s281
        %s283 = sand.u32 %s164, 1
        %s284 = smul.addr %s283, 2
        %s285 = scalar_lea.vmem [#allocation8], %s284
        %s286 = smul.u32 2, %s25
        %s287 = smul.u32 2, %s25
        %v289 = vld [vmem:[%s1] sm:$0xff]
        %v290 = vld [vmem:[%s1 + $0x8] sm:$0xff]
        %v291 = vld [vmem:[%s1 + $0x10] sm:$0xff]
        %v292 = vld [vmem:[%s1 + $0x18] sm:$0xff]
        %v293 = vld [vmem:[%s1 + $0x20] sm:$0xff]
        %v294 = vld [vmem:[%s1 + $0x28] sm:$0xff]
        %v295 = vld [vmem:[%s1 + $0x30] sm:$0xff]
        %v296 = vld [vmem:[%s1 + $0x38] sm:$0xff]
        %v297 = vld [vmem:[%s253] sm:$0xff]
        %v298 = vld [vmem:[%s253 + $0x8] sm:$0xff]
        %v299 = vld [vmem:[%s253 + $0x10] sm:$0xff]
        %v300 = vld [vmem:[%s253 + $0x18] sm:$0xff]
        %v301 = vld [vmem:[%s253 + $0x20] sm:$0xff]
        %v302 = vld [vmem:[%s253 + $0x28] sm:$0xff]
        %v303 = vld [vmem:[%s253 + $0x30] sm:$0xff]
        %v304 = vld [vmem:[%s253 + $0x38] sm:$0xff]
        %v305 = vld [vmem:[%s253 + $0x40] sm:$0xff]
        %v306 = vld [vmem:[%s253 + $0x48] sm:$0xff]
        %v307 = vld [vmem:[%s253 + $0x50] sm:$0xff]
        %v308 = vld [vmem:[%s253 + $0x58] sm:$0xff]
        %v309 = vld [vmem:[%s253 + $0x60] sm:$0xff]
        %v310 = vld [vmem:[%s253 + $0x68] sm:$0xff]
        %v311 = vld [vmem:[%s253 + $0x70] sm:$0xff]
        %v312 = vld [vmem:[%s253 + $0x78] sm:$0xff]
        %v313 = vld [vmem:[%s253 + $0x80] sm:$0xff]
        %v314 = vld [vmem:[%s253 + $0x88] sm:$0xff]
        %v323 = vunpack.c.l.b16 %v289
        %v324 = vunpack.c.h.b16 %v289
        %v325 = vunpack.c.l.b16 %v290
        %v326 = vunpack.c.h.b16 %v290
        %v327 = vunpack.c.l.b16 %v291
        %v328 = vunpack.c.h.b16 %v291
        %v329 = vunpack.c.l.b16 %v292
        %v330 = vunpack.c.h.b16 %v292
        %v331 = vunpack.c.l.b16 %v293
        %v332 = vunpack.c.h.b16 %v293
        %v333 = vunpack.c.l.b16 %v294
        %v334 = vunpack.c.h.b16 %v294
        %v335 = vunpack.c.l.b16 %v295
        %v336 = vunpack.c.h.b16 %v295
        %v337 = vunpack.c.l.b16 %v296
        %v338 = vunpack.c.h.b16 %v296
        %v339 = vpack.c.b16 %v325, %v323
        %v340 = vpack.c.b16 %v326, %v324
        %v341 = vpack.c.b16 %v329, %v327
        %v342 = vpack.c.b16 %v330, %v328
        %v343 = vpack.c.b16 %v333, %v331
        %v344 = vpack.c.b16 %v334, %v332
        %v345 = vpack.c.b16 %v337, %v335
        %v346 = vpack.c.b16 %v338, %v336
        %v369 = vunpack.c.l.b16 %v297
        %v370 = vunpack.c.h.b16 %v297
        %v371 = vunpack.c.l.b16 %v298
        %v372 = vunpack.c.h.b16 %v298
        %v373 = vunpack.c.l.b16 %v299
        %v374 = vunpack.c.h.b16 %v299
        %v375 = vunpack.c.l.b16 %v300
        %v376 = vunpack.c.h.b16 %v300
        %v377 = vunpack.c.l.b16 %v301
        %v378 = vunpack.c.h.b16 %v301
        %v379 = vunpack.c.l.b16 %v302
        %v380 = vunpack.c.h.b16 %v302
        %v381 = vunpack.c.l.b16 %v303
        %v382 = vunpack.c.h.b16 %v303
        %v383 = vunpack.c.l.b16 %v304
        %v384 = vunpack.c.h.b16 %v304
        %v385 = vunpack.c.l.b16 %v305
        %v386 = vunpack.c.h.b16 %v305
        %v387 = vunpack.c.l.b16 %v306
        %v388 = vunpack.c.h.b16 %v306
        %v389 = vunpack.c.l.b16 %v307
        %v390 = vunpack.c.h.b16 %v307
        %v391 = vunpack.c.l.b16 %v308
        %v392 = vunpack.c.h.b16 %v308
        %v393 = vunpack.c.l.b16 %v309
        %v394 = vunpack.c.h.b16 %v309
        %v395 = vunpack.c.l.b16 %v310
        %v396 = vunpack.c.h.b16 %v310
        %v397 = vunpack.c.l.b16 %v311
        %v398 = vunpack.c.h.b16 %v311
        %v399 = vunpack.c.l.b16 %v312
        %v400 = vunpack.c.h.b16 %v312
        %v401 = vunpack.c.l.b16 %v313
        %v402 = vunpack.c.h.b16 %v313
        %v403 = vunpack.c.l.b16 %v314
        %v404 = vunpack.c.h.b16 %v314
        %v405 = vpack.c.b16 %v371, %v369
        %v406 = vpack.c.b16 %v372, %v370
        %v407 = vpack.c.b16 %v375, %v373
        %v408 = vpack.c.b16 %v376, %v374
        %v409 = vpack.c.b16 %v379, %v377
        %v410 = vpack.c.b16 %v380, %v378
        %v411 = vpack.c.b16 %v383, %v381
        %v412 = vpack.c.b16 %v384, %v382
        %v413 = vpack.c.b16 %v387, %v385
        %v414 = vpack.c.b16 %v388, %v386
        %v415 = vpack.c.b16 %v391, %v389
        %v416 = vpack.c.b16 %v392, %v390
        %v417 = vpack.c.b16 %v395, %v393
        %v418 = vpack.c.b16 %v396, %v394
        %v419 = vpack.c.b16 %v399, %v397
        %v420 = vpack.c.b16 %v400, %v398
        %v421 = vpack.c.b16 %v403, %v401
        %v422 = vpack.c.b16 %v404, %v402
        %vm441 = vcmask 130048
        %v443 = vsel %vm441, %v340, 0
        %v446 = vsel %vm441, %v342, 0
        %v449 = vsel %vm441, %v344, 0
        %v452 = vsel %vm441, %v346, 0
        %454 = vmatprep.subr.bf16.mxu0 %v420
        %455 = vmatpush1.bf16.msra.mxu0 %v419
        %456 = vmatprep.subr.bf16.mxu0 %v418
        %457 = vmatpush1.bf16.msra.mxu0 %v417
        %458 = vmatprep.subr.bf16.mxu0 %v416
        %459 = vmatpush1.bf16.msra.mxu0 %v415
        %460 = vmatprep.subr.bf16.mxu0 %v414
        %461 = vmatpush1.bf16.msra.mxu0 %v413
        %462 = vmatprep.subr.bf16.mxu0 %v412
        %463 = vmatpush1.bf16.msra.mxu0 %v411
        %464 = vmatprep.subr.bf16.mxu0 %v410
        %465 = vmatpush1.bf16.msra.mxu0 %v409
        %466 = vmatprep.subr.bf16.mxu0 %v408
        %467 = vmatpush1.bf16.msra.mxu0 %v407
        %468 = vmatprep.subr.bf16.mxu0 %v406
        %469 = vmatpush1.bf16.msra.mxu0 %v405
        %470 = vmatprep.subr.bf16.mxu0 0
        %471 = vmatpush2.bf16.msra.mxu0 0
        %472 = vmatprep.subr.bf16.mxu0 0
        %473 = vmatpush2.bf16.msra.mxu0 0
        %474 = vmatprep.subr.bf16.mxu0 0
        %475 = vmatpush2.bf16.msra.mxu0 0
        %476 = vmatprep.subr.bf16.mxu0 0
        %477 = vmatpush2.bf16.msra.mxu0 0
        %478 = vmatprep.subr.bf16.mxu0 0
        %479 = vmatpush2.bf16.msra.mxu0 0
        %480 = vmatprep.subr.bf16.mxu0 0
        %481 = vmatpush2.bf16.msra.mxu0 0
        %482 = vmatprep.subr.bf16.mxu0 0
        %483 = vmatpush2.bf16.msra.mxu0 0
        %484 = vmatprep.subr.bf16.mxu0 %v422
        %485 = vmatpush2.bf16.msra.mxu0 %v421
        %486 = vmatprep.mubr.bf16.mxu0 %v443
        %487 = vmatmul.mubr.bf16.gmra.mxu0 %v339
        %v488 = vpop.f32.mrf.mxu0
        %v489 = vadd.f32 0.0, %v488
        %v490 = vpop.f32.mrf.mxu0
        %v491 = vadd.f32 0.0, %v490
        %v492 = vpop.f32.mrf.mxu0
        %v493 = vadd.f32 0.0, %v492
        %v494 = vpop.f32.mrf.mxu0
        %v495 = vadd.f32 0.0, %v494
        %496 = vmatprep.mubr.bf16.mxu0 %v446
        %497 = vmatmul.mubr.bf16.gmra.mxu0 %v341
        %v498 = vpop.f32.mrf.mxu0
        %v499 = vadd.f32 0.0, %v498
        %v500 = vpop.f32.mrf.mxu0
        %v501 = vadd.f32 0.0, %v500
        %v502 = vpop.f32.mrf.mxu0
        %v503 = vadd.f32 0.0, %v502
        %v504 = vpop.f32.mrf.mxu0
        %v505 = vadd.f32 0.0, %v504
        %506 = vmatprep.mubr.bf16.mxu0 %v449
        %507 = vmatmul.mubr.bf16.gmra.mxu0 %v343
        %v508 = vpop.f32.mrf.mxu0
        %v509 = vadd.f32 0.0, %v508
        %v510 = vpop.f32.mrf.mxu0
        %v511 = vadd.f32 0.0, %v510
        %v512 = vpop.f32.mrf.mxu0
        %v513 = vadd.f32 0.0, %v512
        %v514 = vpop.f32.mrf.mxu0
        %v515 = vadd.f32 0.0, %v514
        %516 = vmatprep.mubr.bf16.mxu0 %v452
        %517 = vmatmul.mubr.bf16.gmra.mxu0 %v345
        %v518 = vpop.f32.mrf.mxu0
        %v519 = vadd.f32 0.0, %v518
        %v520 = vpop.f32.mrf.mxu0
        %v521 = vadd.f32 0.0, %v520
        %v522 = vpop.f32.mrf.mxu0
        %v523 = vadd.f32 0.0, %v522
        %v524 = vpop.f32.mrf.mxu0
        %v525 = vadd.f32 0.0, %v524
        %526 = vdwg.mxu0
        %v527 = vmax.f32 %v489, 0.0
        %v528 = vmax.f32 %v491, 0.0
        %v529 = vmax.f32 %v493, 0.0
        %v530 = vmax.f32 %v495, 0.0
        %v531 = vmax.f32 %v499, 0.0
        %v532 = vmax.f32 %v501, 0.0
        %v533 = vmax.f32 %v503, 0.0
        %v534 = vmax.f32 %v505, 0.0
        %v535 = vmax.f32 %v509, 0.0
        %v536 = vmax.f32 %v511, 0.0
        %v537 = vmax.f32 %v513, 0.0
        %v538 = vmax.f32 %v515, 0.0
        %v539 = vmax.f32 %v519, 0.0
        %v540 = vmax.f32 %v521, 0.0
        %v541 = vmax.f32 %v523, 0.0
        %v542 = vmax.f32 %v525, 0.0
        %v543 = vpack.c.bf16 %v529, %v527
        %v544 = vpack.c.bf16 %v530, %v528
        %v545 = vpack.c.bf16 %v533, %v531
        %v546 = vpack.c.bf16 %v534, %v532
        %v547 = vpack.c.bf16 %v537, %v535
        %v548 = vpack.c.bf16 %v538, %v536
        %v549 = vpack.c.bf16 %v541, %v539
        %v550 = vpack.c.bf16 %v542, %v540
        %v551 = vld [vmem:[#allocation6] sm:$0xf]
        %v552 = vld [vmem:[#allocation6 + $0x4] sm:$0xf]
        %v553 = vld [vmem:[#allocation6 + $0x8] sm:$0xf]
        %v554 = vld [vmem:[#allocation6 + $0xc] sm:$0xf]
        %v555 = vld [vmem:[%s3] sm:$0xff]
        %v556 = vld [vmem:[%s3 + $0x8] sm:$0xff]
        %v557 = vld [vmem:[%s3 + $0x10] sm:$0xff]
        %v558 = vld [vmem:[%s3 + $0x18] sm:$0xff]
        %560 = vset.pattern.permute.xlu0 0
        %561 = vperm.xlu0 %560, %v555
        %v562 = vpop.permute.xlu0 %561
        %565 = vset.pattern.permute.xlu0 0
        %566 = vperm.xlu0 %565, %v556
        %v567 = vpop.permute.xlu0 %566
        %570 = vset.pattern.permute.xlu0 0
        %571 = vperm.xlu0 %570, %v557
        %v572 = vpop.permute.xlu0 %571
        %575 = vset.pattern.permute.xlu0 0
        %576 = vperm.xlu0 %575, %v558
        %v577 = vpop.permute.xlu0 %576
        %v583 = vunpack.c.l.b16 %v551
        %v584 = vunpack.c.l.b16 %v552
        %v585 = vunpack.c.l.b16 %v553
        %v586 = vunpack.c.l.b16 %v554
        %v587 = vpack.c.b16 %v584, %v583
        %v588 = vpack.c.b16 %v586, %v585
        %vm589 = vcmask 523264
        %v591 = vsel %vm589, %v587, 0
        %v594 = vsel %vm589, %v588, 0
        %596 = vmatprep.subr.bf16.mxu0 0
        %597 = vmatpush1.bf16.msra.mxu0 0
        %598 = vmatprep.subr.bf16.mxu0 0
        %599 = vmatpush1.bf16.msra.mxu0 0
        %600 = vmatprep.subr.bf16.mxu0 0
        %601 = vmatpush1.bf16.msra.mxu0 0
        %602 = vmatprep.subr.bf16.mxu0 0
        %603 = vmatpush1.bf16.msra.mxu0 0
        %604 = vmatprep.subr.bf16.mxu0 %v550
        %605 = vmatpush1.bf16.msra.mxu0 %v549
        %606 = vmatprep.subr.bf16.mxu0 %v548
        %607 = vmatpush1.bf16.msra.mxu0 %v547
        %608 = vmatprep.subr.bf16.mxu0 %v546
        %609 = vmatpush1.bf16.msra.mxu0 %v545
        %610 = vmatprep.subr.bf16.mxu0 %v544
        %611 = vmatpush1.bf16.msra.mxu0 %v543
        %612 = vmatprep.subr.bf16.mxu0 0
        %613 = vmatpush2.bf16.msra.mxu0 0
        %614 = vmatprep.subr.bf16.mxu0 0
        %615 = vmatpush2.bf16.msra.mxu0 0
        %616 = vmatprep.subr.bf16.mxu0 0
        %617 = vmatpush2.bf16.msra.mxu0 0
        %618 = vmatprep.subr.bf16.mxu0 0
        %619 = vmatpush2.bf16.msra.mxu0 0
        %620 = vmatprep.subr.bf16.mxu0 0
        %621 = vmatpush2.bf16.msra.mxu0 0
        %622 = vmatprep.subr.bf16.mxu0 0
        %623 = vmatpush2.bf16.msra.mxu0 0
        %624 = vmatprep.subr.bf16.mxu0 0
        %625 = vmatpush2.bf16.msra.mxu0 0
        %626 = vmatprep.subr.bf16.mxu0 0
        %627 = vmatpush2.bf16.msra.mxu0 0
        %628 = vmatprep.mubr.bf16.mxu0 0
        %629 = vmatmul.mubr.bf16.gmra.mxu0 %v591
        %v630 = vpop.f32.mrf.mxu0
        %v631 = vadd.f32 %v562, %v630
        %v632 = vpop.f32.mrf.mxu0
        %v633 = vadd.f32 %v562, %v632
        %v634 = vpop.f32.mrf.mxu0
        %v635 = vadd.f32 %v567, %v634
        %v636 = vpop.f32.mrf.mxu0
        %v637 = vadd.f32 %v567, %v636
        %638 = vmatprep.mubr.bf16.mxu0 0
        %639 = vmatmul.mubr.bf16.gmra.mxu0 %v594
        %v640 = vpop.f32.mrf.mxu0
        %v641 = vadd.f32 %v572, %v640
        %v642 = vpop.f32.mrf.mxu0
        %v643 = vadd.f32 %v572, %v642
        %v644 = vpop.f32.mrf.mxu0
        %v645 = vadd.f32 %v577, %v644
        %v646 = vpop.f32.mrf.mxu0
        %v647 = vadd.f32 %v577, %v646
        %648 = vdwg.mxu0
        %v649 = vmax.f32 %v631, 0.0
        %v650 = vmax.f32 %v633, 0.0
        %v651 = vmax.f32 %v635, 0.0
        %v652 = vmax.f32 %v637, 0.0
        %v653 = vmax.f32 %v641, 0.0
        %v654 = vmax.f32 %v643, 0.0
        %v655 = vmax.f32 %v645, 0.0
        %v656 = vmax.f32 %v647, 0.0
        %v657 = vld [vmem:[%s4] sm:$0xff]
        %v658 = vld [vmem:[%s4 + $0x8] sm:$0xff]
        %v659 = vld [vmem:[%s4 + $0x10] sm:$0xff]
        %v660 = vld [vmem:[%s4 + $0x18] sm:$0xff]
        %662 = vset.pattern.permute.xlu0 0
        %663 = vperm.xlu0 %662, %v657
        %v664 = vpop.permute.xlu0 %663
        %667 = vset.pattern.permute.xlu0 0
        %668 = vperm.xlu0 %667, %v658
        %v669 = vpop.permute.xlu0 %668
        %672 = vset.pattern.permute.xlu0 0
        %673 = vperm.xlu0 %672, %v659
        %v674 = vpop.permute.xlu0 %673
        %677 = vset.pattern.permute.xlu0 0
        %678 = vperm.xlu0 %677, %v660
        %v679 = vpop.permute.xlu0 %678
        %v681 = vmul.f32 %v664, %v649
        %v682 = vmul.f32 %v664, %v650
        %v683 = vmul.f32 %v669, %v651
        %v684 = vmul.f32 %v669, %v652
        %v685 = vmul.f32 %v674, %v653
        %v686 = vmul.f32 %v674, %v654
        %v687 = vmul.f32 %v679, %v655
        %v688 = vmul.f32 %v679, %v656
        %v689 = vadd.f32 %v681, %v683
        %v690 = vadd.f32 %v689, %v685
        %v691 = vadd.f32 %v690, %v687
        %v692 = vrot.slane %v691, 4
        %v693 = vadd.f32 %v691, %v692
        %v694 = vrot.slane %v693, 2
        %v695 = vadd.f32 %v693, %v694
        %v696 = vrot.slane %v695, 1
        %v697 = vadd.f32 %v695, %v696
        %v698 = vadd.f32 %v682, %v684
        %v699 = vadd.f32 %v698, %v686
        %v700 = vadd.f32 %v699, %v688
        %v701 = vrot.slane %v700, 4
        %v702 = vadd.f32 %v700, %v701
        %v703 = vrot.slane %v702, 2
        %v704 = vadd.f32 %v702, %v703
        %v705 = vrot.slane %v704, 1
        %v706 = vadd.f32 %v704, %v705
        %s707 = sld [smem:[#allocation2]]
        %v708 = vstv %s707
        %v709 = vadd.f32 %v697, %v708
        %v710 = vadd.f32 %v706, %v708
        %v711 = vxor.u32 %v709, 2147483648
        %v712 = vxor.u32 %v710, 2147483648
        %v713 = vmul.f32 %v711, 1.442695
        %v714 = vpow.pop %v713
        %v715 = vmul.f32 %v712, 1.442695
        %v716 = vpow.pop %v715
        %v717 = vadd.f32 %v714, 1.0
        %v718 = vadd.f32 %v716, 1.0
        %v719 = vrcp.pop %v717
        %v720 = vmul.f32 1.0, %v719
        %v721 = vrcp.pop %v718
        %v722 = vmul.f32 1.0, %v721
        %v725 = vcombine.low %v720, %v722
        %v727 = vunpack.c.l.s4 1966171168
        %v728 = vunpack.c.0.s8 %v727
        %v729 = vlaneseq
        %v730 = vshrl.u32 %v729, 7
        %v731 = vsub.s32 %v728, %v730
        %v732 = vrot.slane %v725, %v731
        %v734 = vunpack.c.l.s4 1966171168
        %v735 = vunpack.c.0.s8 %v734
        %v736 = vlaneseq
        %v737 = vshrl.u32 %v736, 7
        %v738 = vsub.s32 %v735, %v737
        %v739 = vrot.slane %v732, %v738
        %v741 = vlaneseq
        %vm742 = vcmp.ge.s32.totalorder %v741, 0
        %vm743 = vcmp.lt.s32.totalorder %v741, 256
        %vm744 = vmand %vm742, %vm743
        %745 = vst.msk [vmem:[%s285] sm:$0x3] %vm744, %v739
        %s746 = sand.u32 %s164, 1
        %s747 = scalar_lea.sflag [#allocation5], %s746
        %s748 = sand.u32 %s164, 1
        %s749 = smul.addr %s748, 2
        %s750 = scalar_lea.vmem [#allocation8], %s749
        // Predicated region
        $region53: #{tpu_custom_call.1} parent=43 // pred_check
          %p751 = pneg %p174
        $region54: #{tpu_custom_call.1} parent=43 // pred_check_branch
          %753 = sbr.rel (%p751) target = $region56
        $region55: #{tpu_custom_call.1} parent=43 // pred_region
          %s754 = smul.u32 2, %s25
          %s756 = ssub.s32 32, 32
          %757 = vsyncadd %s747, %s756
          %s758 = smul.addr %s754, 16
          %s759 = scalar_lea.hbm %s6, %s758
          %s761 = sshll.u32 %s750, 4
          %s762 = int_to_ptr.vmem [resolvable:$true] %s761
          %764 = dma.vmem_to_hbm [thread:$0]  %s762, 32, %s759, %s747
        $region56: #{tpu_custom_call.1} parent=43 // pred_fallthru
          _
      $region44: #{tpu_custom_call.1} parent=5 // pred_fallthru
        _
      %p765 = scmp.le.s32.totalorder 2, %s20
      // Predicated region
      $region57: #{tpu_custom_call.1} parent=5 // pred_check
        %p766 = pneg %p765
      $region58: #{tpu_custom_call.1} parent=5 // pred_check_branch
        %768 = sbr.rel (%p766) target = $region60
      $region59: #{tpu_custom_call.1} parent=5 // pred_region
        %s769 = ssub.s32 %s20, 2
        // Predicated region
        $region61: #{tpu_custom_call.1} parent=59 // pred_check
          %p770 = pneg %p180
        $region62: #{tpu_custom_call.1} parent=59 // pred_check_branch
          %772 = sbr.rel (%p770) target = $region64
        $region63: #{tpu_custom_call.1} parent=59 // pred_region
          %s773 = sand.u32 %s165, 1
          %s774 = scalar_lea.sflag [#allocation5], %s773
          %s775 = sand.u32 %s165, 1
          %s776 = smul.addr %s775, 2
          %s777 = scalar_lea.vmem [#allocation8], %s776
          %778 = dma.done %s774, 32
        $region64: #{tpu_custom_call.1} parent=59 // pred_fallthru
          _
      $region60: #{tpu_custom_call.1} parent=5 // pred_fallthru
        _
    $region6: #{tpu_custom_call.1} parent=1 // loop_footer
      %s24 = sadd.s32 1, %s20
    $region7: #{tpu_custom_call.1} parent=1 // loop_footer_branch
      %19 = sbr.rel target = $region3
    $region8: #{tpu_custom_call.1} parent=1 // loop_exit
      _
    %779 = vsyncpa [#allocation4], 1
    %s780 = scalar_lea.sflag [#allocation4], 1
    %781 = vsyncpa %s780, 1
    %782 = vsyncpa [#allocation7], 1
    %783 = vsyncpa [#allocation5], 1
    %s784 = scalar_lea.sflag [#allocation5], 1
    %785 = vsyncpa %s784, 1

</llo_original>
